<compile_context>
chip_gen: v5e
topology: v5e:2x2
jax: 0.10.0
libtpu: 0.0.40
codegen_flags: <defaults>
</compile_context>

<pallas_src>
import functools

import jax
import jax.numpy as jnp
from jax.experimental import pallas as pl
from jax.experimental.pallas import tpu as pltpu

_LANE = 128      # lane width: pad hidden/output feature dims to multiples of 128
_SUBLANE = 8     # sublane width: batch tiles are multiples of 8


def _round_up(x: int, m: int) -> int:
    return ((x + m - 1) // m) * m


def _pad_2d(a, rows: int, cols: int):
    pr, pc = rows - a.shape[0], cols - a.shape[1]
    if pr == 0 and pc == 0:
        return a
    return jnp.pad(a, ((0, pr), (0, pc)))


def _device_kind() -> str:
    try:
        return jax.devices()[0].device_kind.lower()
    except Exception:
        return ""


def _vmem_cap_bytes(kind: str) -> int:
    # v7x: 64 MiB VMEM per TensorCore -> stay well below; v4/v5e/v5p/v6e: 128 MiB.
    if "7" in kind:
        return 40 << 20
    return 100 << 20


def _default_tile_b(kind: str) -> int:
    # v5e: only 1 vector-store slot and no bf16 VALU -> keep 256-row tiles.
    if "v5e" in kind or "v5 lite" in kind or "v5lite" in kind:
        return 256
    return 512   # v6e / v7x: larger tiles amortize per-grid-step overhead


def _resident_spec(shape):
    """Grid-resident block (constant index_map); single-buffered when supported."""
    try:
        return pl.BlockSpec(shape, lambda i: (0, 0), pipeline_mode=pl.Buffered(1))
    except (TypeError, AttributeError):   # older JAX without pipeline_mode
        return pl.BlockSpec(shape, lambda i: (0, 0))


def _make_mlp_kernel(n_layers: int, relu_last: bool):
    """Fused kernel for n_layers Linear layers; ReLU between layers and, if
    relu_last, also after the final layer of this group (i.e. this group does
    not contain the network's output layer)."""

    def kernel(*refs):
        # refs = (x_ref, w1, b1, ..., wn, bn, o_ref)
        x_ref = refs[0]
        o_ref = refs[-1]
        p = refs[1:-1]

        h = x_ref[...].astype(jnp.bfloat16)                # (TILE_B, in_feat)
        acc = None
        for i in range(n_layers):
            w = p[2 * i][...]                              # bf16 (in_p, out_p)
            b = p[2 * i + 1][...]                          # f32  (1, out_p)
            acc = jnp.dot(h, w, preferred_element_type=jnp.float32) + b
            if i < n_layers - 1 or relu_last:
                acc = jnp.maximum(acc, 0.0)
            if i < n_layers - 1:
                h = acc.astype(jnp.bfloat16)
        o_ref[...] = acc.astype(o_ref.dtype)

    return kernel


def _fused_mlp_call(x, layer_params, out_dtype, relu_last, tile_b_eff, grid_b, vmem_cap):
    """One pallas_call running a group of consecutive Linear(+ReLU) layers with
    all of the group's weights VMEM-resident (single-buffered)."""
    n = len(layer_params)
    batch_p, in_feat = x.shape
    out_p = layer_params[-1][0].shape[1]

    in_specs = [pl.BlockSpec((tile_b_eff, in_feat), lambda i: (i, 0))]
    flat = []
    for (w, b) in layer_params:
        in_specs.append(_resident_spec(w.shape))
        in_specs.append(_resident_spec(b.shape))
        flat.extend([w, b])
    out_spec = pl.BlockSpec((tile_b_eff, out_p), lambda i: (i, 0))

    # VMEM budget: resident weights x1 (Buffered(1)) + double-buffered input /
    # output tiles + f32 activation headroom + fixed margin.
    x_isz = jnp.dtype(x.dtype).itemsize
    o_isz = jnp.dtype(out_dtype).itemsize
    w_bytes = sum(w.size * 2 + b.size * 4 for (w, b) in layer_params)
    io_bytes = 2 * tile_b_eff * (in_feat * x_isz + out_p * o_isz)
    max_w = max([in_feat] + [w.shape[1] for (w, _) in layer_params])
    act_bytes = 2 * tile_b_eff * max_w * 4
    need = w_bytes + io_bytes + act_bytes + (4 << 20)
    vmem_limit = int(min(vmem_cap, max(need, 32 << 20)))

    flops = 2 * batch_p * sum(w.shape[0] * w.shape[1] for (w, _) in layer_params)
    bytes_accessed = batch_p * in_feat * x_isz + w_bytes + batch_p * out_p * o_isz

    return pl.pallas_call(
        _make_mlp_kernel(n, relu_last),
        out_shape=jax.ShapeDtypeStruct((batch_p, out_p), out_dtype),
        grid=(grid_b,),
        in_specs=in_specs,
        out_specs=out_spec,
        compiler_params=pltpu.CompilerParams(
            dimension_semantics=("parallel",),   # batch tiles are independent
            vmem_limit_bytes=vmem_limit,
        ),
        cost_estimate=pl.CostEstimate(
            flops=flops, transcendentals=0, bytes_accessed=bytes_accessed),
    )(x, *flat)


def _partition_layers(prepared_params, weight_budget_bytes):
    """Greedily group consecutive layers so each group's resident bf16 weights
    (+f32 biases) fit the per-group VMEM weight budget."""
    groups, cur, cur_bytes = [], [], 0
    for i, (w, b) in enumerate(prepared_params):
        lb = w.size * 2 + b.size * 4
        if cur and cur_bytes + lb > weight_budget_bytes:
            groups.append(cur)
            cur, cur_bytes = [], 0
        cur.append(i)
        cur_bytes += lb
    groups.append(cur)
    return groups


def prepare_qnet_params(params):
    """One-time weight preparation (do NOT redo per forward call).

    params: list of (W_t, b) with W_t shape (in_dim, out_dim) = torch W.T,
            b shape (1, out_dim) or (out_dim,).
    Returns list of (W_bf16 padded, b_f32 padded):
      * layer 0 keeps its true input dim (state_dim) -> no feature padding of
        the streamed state,
      * every hidden/output dim is zero-padded to a multiple of 128 and the
        next layer's input rows are padded to match (numerically exact).
    """
    prepared = []
    prev_out_p = None
    for i, (w, b) in enumerate(params):
        in_dim, out_dim = w.shape
        in_p = in_dim if i == 0 else prev_out_p
        out_p = _round_up(out_dim, _LANE)
        w_pad = _pad_2d(jnp.asarray(w, jnp.float32).astype(jnp.bfloat16), in_p, out_p)
        b_pad = _pad_2d(jnp.asarray(b, jnp.float32).reshape(1, -1), 1, out_p)
        prepared.append((w_pad, b_pad))
        prev_out_p = out_p
    return prepared


@functools.partial(
    jax.jit, static_argnames=("action_dim", "tile_b", "weight_budget_bytes"))
def qnet_forward(state, prepared_params, action_dim, tile_b=None,
                 weight_budget_bytes=None):
    """QNet forward: state (batch, state_dim) f32 -> Q-values (batch, action_dim) f32.

    prepared_params must come from prepare_qnet_params (pre-padded / pre-cast).
    """
    batch = state.shape[0]
    kind = _device_kind()
    if tile_b is None:
        tile_b = _default_tile_b(kind)
    vmem_cap = _vmem_cap_bytes(kind)
    if weight_budget_bytes is None:
        weight_budget_bytes = max(vmem_cap - (16 << 20), vmem_cap // 2)

    # Batch: round up to a sublane multiple only (<= 7 extra rows); the last
    # batch tile is otherwise ragged and masked by Pallas.  Rows are fully
    # independent, so garbage rows in the ragged tail are safe and sliced off.
    x = state.astype(jnp.float32)
    batch8 = _round_up(batch, _SUBLANE)
    if batch8 != batch:
        x = jnp.pad(x, ((0, batch8 - batch), (0, 0)))
    tile_b_eff = min(tile_b, batch8)
    grid_b = pl.cdiv(batch8, tile_b_eff)

    # Partition layers so each group's resident weights fit VMEM (fallback for
    # deep/wide nets on v7x's 64 MiB); typical QNets form a single group.
    groups = _partition_layers(prepared_params, weight_budget_bytes)

    n_total = len(prepared_params)
    h = x
    for gi, idxs in enumerate(groups):
        layer_params = [prepared_params[i] for i in idxs]
        is_last_group = gi == len(groups) - 1
        out_dtype = jnp.float32 if is_last_group else jnp.bfloat16
        relu_last = idxs[-1] != n_total - 1   # ReLU after every layer except the network's last
        h = _fused_mlp_call(h, layer_params, out_dtype, relu_last,
                            tile_b_eff, grid_b, vmem_cap)

    return h[:batch, :action_dim]


def init_qnet_params(key, mid_dim, num_layer, state_dim, action_dim):
    """Deterministic parameter init matching build_mlp layer shapes.

    Returns list of (W_t, b) with W_t = W.T, i.e. shape (in_dim, out_dim).
    """
    assert num_layer >= 1
    if num_layer == 1:
        dims = [(state_dim, action_dim)]
    else:
        dims = [(state_dim, mid_dim)]
        dims += [(mid_dim, mid_dim)] * (num_layer - 2)
        dims += [(mid_dim, action_dim)]

    params = []
    for (in_dim, out_dim) in dims:
        key, kw, kb = jax.random.split(key, 3)
        bound = 1.0 / jnp.sqrt(jnp.float32(in_dim))  # torch.nn.Linear-like init
        w_t = jax.random.uniform(kw, (in_dim, out_dim), jnp.float32, -bound, bound)
        b = jax.random.uniform(kb, (1, out_dim), jnp.float32, -bound, bound)
        params.append((w_t, b))
    return params


def qnet_reference(state, params):
    """Plain-JAX f32 reference of the same forward pass."""
    h = state
    for i, (w, b) in enumerate(params):
        h = h @ w + b
        if i < len(params) - 1:
            h = jnp.maximum(h, 0.0)
    return h


# TODO(synk): QNet.get_action's epsilon-greedy branch uses host-side
# numpy.random and torch.randint; only the deterministic forward is kernelized.

if __name__ == "__main__":
    # Small shapes consistent with QNet.forward: state (batch, state_dim)
    batch, state_dim, mid_dim, num_layer, action_dim = 2, 8, 32, 3, 4

    key = jax.random.PRNGKey(0)
    key, k_state = jax.random.split(key)
    state = jax.random.normal(k_state, (batch, state_dim), jnp.float32)
    params = init_qnet_params(key, mid_dim, num_layer, state_dim, action_dim)
    prepared = prepare_qnet_params(params)   # one-time pad/cast (hoisted out of forward)

    q_values = jax.block_until_ready(qnet_forward(state, prepared, action_dim))
    q_ref = qnet_reference(state, params)
    assert q_values.shape == (batch, action_dim)
    # bf16 matmul operands with f32 accumulation -> loose-but-tight-enough tol
    assert jnp.allclose(q_values, q_ref, atol=5e-2, rtol=5e-2), (
        "Pallas kernel output mismatch vs reference (batch=2)"
    )

    # Exercise the multi-step grid with a ragged last batch tile.
    key, k_big = jax.random.split(key)
    big_batch = 300
    state_big = jax.random.normal(k_big, (big_batch, state_dim), jnp.float32)
    q_big = jax.block_until_ready(
        qnet_forward(state_big, prepared, action_dim, tile_b=128))
    q_big_ref = qnet_reference(state_big, params)
    assert q_big.shape == (big_batch, action_dim)
    assert jnp.allclose(q_big, q_big_ref, atol=5e-2, rtol=5e-2), (
        "Pallas kernel output mismatch vs reference (batch=300, gridded)"
    )

    # Exercise the multi-group fallback (weights too big to stay resident,
    # e.g. deep nets on v7x) by forcing a tiny per-group weight budget.
    q_split = jax.block_until_ready(
        qnet_forward(state_big, prepared, action_dim, tile_b=128,
                     weight_budget_bytes=1))
    assert jnp.allclose(q_split, q_big_ref, atol=7e-2, rtol=7e-2), (
        "Pallas kernel output mismatch vs reference (multi-group fallback)"
    )

    print("KERNEL_OK")
</pallas_src>

<mosaic_0001>
module attributes {stable_mosaic.version = 11 : i64} {
  func.func @kernel(%arg0: i32, %arg1: memref<8x8xf32, #tpu.memory_space<vmem>>, %arg2: memref<8x128xbf16, #tpu.memory_space<vmem>>, %arg3: memref<1x128xf32, #tpu.memory_space<vmem>>, %arg4: memref<128x128xbf16, #tpu.memory_space<vmem>>, %arg5: memref<1x128xf32, #tpu.memory_space<vmem>>, %arg6: memref<128x128xbf16, #tpu.memory_space<vmem>>, %arg7: memref<1x128xf32, #tpu.memory_space<vmem>>, %arg8: memref<8x128xf32, #tpu.memory_space<vmem>>) attributes {dimension_semantics = [#tpu.dimension_semantics<parallel>], iteration_bounds = array<i64: 1>, scalar_prefetch = 0 : i64, scratch_operands = 0 : i64, tpu.core_type = #tpu.core_type<tc>, window_params = [{transform_indices = @transform_0, window_bounds = array<i64: 8, 8>}, {pipeline_mode = #tpu.pipeline_mode<synchronous>, transform_indices = @transform_1, window_bounds = array<i64: 8, 128>}, {pipeline_mode = #tpu.pipeline_mode<synchronous>, transform_indices = @transform_2, window_bounds = array<i64: 1, 128>}, {pipeline_mode = #tpu.pipeline_mode<synchronous>, transform_indices = @transform_3, window_bounds = array<i64: 128, 128>}, {pipeline_mode = #tpu.pipeline_mode<synchronous>, transform_indices = @transform_4, window_bounds = array<i64: 1, 128>}, {pipeline_mode = #tpu.pipeline_mode<synchronous>, transform_indices = @transform_5, window_bounds = array<i64: 128, 128>}, {pipeline_mode = #tpu.pipeline_mode<synchronous>, transform_indices = @transform_6, window_bounds = array<i64: 1, 128>}, {transform_indices = @transform_7, window_bounds = array<i64: 8, 128>}]} {
    %c0 = arith.constant 0 : index
    %c0_0 = arith.constant 0 : index
    %0 = vector.load %arg1[%c0, %c0_0] : memref<8x8xf32, #tpu.memory_space<vmem>>, vector<8x8xf32>
    %1 = arith.truncf %0 : vector<8x8xf32> to vector<8x8xbf16>
    %c0_1 = arith.constant 0 : index
    %c0_2 = arith.constant 0 : index
    %2 = vector.load %arg2[%c0_1, %c0_2] : memref<8x128xbf16, #tpu.memory_space<vmem>>, vector<8x128xbf16>
    %c0_3 = arith.constant 0 : index
    %c0_4 = arith.constant 0 : index
    %3 = vector.load %arg3[%c0_3, %c0_4] : memref<1x128xf32, #tpu.memory_space<vmem>>, vector<1x128xf32>
    %cst = arith.constant dense<0.000000e+00> : vector<8x128xf32>
    %4 = tpu.matmul %1, %2, %cst {dimension_numbers = #tpu.dot_dimension_numbers<[1], [0], [0], [1], [0, 0, 1, 1], [], []>} : vector<8x8xbf16>, vector<8x128xbf16>, vector<8x128xf32> -> vector<8x128xf32>
    %5 = vector.broadcast %3 : vector<1x128xf32> to vector<8x128xf32>
    %6 = arith.addf %4, %5 : vector<8x128xf32>
    %cst_5 = arith.constant 0.000000e+00 : f32
    %7 = vector.broadcast %cst_5 : f32 to vector<8x128xf32>
    %8 = arith.maximumf %6, %7 : vector<8x128xf32>
    %9 = arith.truncf %8 : vector<8x128xf32> to vector<8x128xbf16>
    %c0_6 = arith.constant 0 : index
    %c0_7 = arith.constant 0 : index
    %10 = vector.load %arg4[%c0_6, %c0_7] : memref<128x128xbf16, #tpu.memory_space<vmem>>, vector<128x128xbf16>
    %c0_8 = arith.constant 0 : index
    %c0_9 = arith.constant 0 : index
    %11 = vector.load %arg5[%c0_8, %c0_9] : memref<1x128xf32, #tpu.memory_space<vmem>>, vector<1x128xf32>
    %cst_10 = arith.constant dense<0.000000e+00> : vector<8x128xf32>
    %12 = tpu.matmul %9, %10, %cst_10 {dimension_numbers = #tpu.dot_dimension_numbers<[1], [0], [0], [1], [0, 0, 1, 1], [], []>} : vector<8x128xbf16>, vector<128x128xbf16>, vector<8x128xf32> -> vector<8x128xf32>
    %13 = vector.broadcast %11 : vector<1x128xf32> to vector<8x128xf32>
    %14 = arith.addf %12, %13 : vector<8x128xf32>
    %cst_11 = arith.constant 0.000000e+00 : f32
    %15 = vector.broadcast %cst_11 : f32 to vector<8x128xf32>
    %16 = arith.maximumf %14, %15 : vector<8x128xf32>
    %17 = arith.truncf %16 : vector<8x128xf32> to vector<8x128xbf16>
    %c0_12 = arith.constant 0 : index
    %c0_13 = arith.constant 0 : index
    %18 = vector.load %arg6[%c0_12, %c0_13] : memref<128x128xbf16, #tpu.memory_space<vmem>>, vector<128x128xbf16>
    %c0_14 = arith.constant 0 : index
    %c0_15 = arith.constant 0 : index
    %19 = vector.load %arg7[%c0_14, %c0_15] : memref<1x128xf32, #tpu.memory_space<vmem>>, vector<1x128xf32>
    %cst_16 = arith.constant dense<0.000000e+00> : vector<8x128xf32>
    %20 = tpu.matmul %17, %18, %cst_16 {dimension_numbers = #tpu.dot_dimension_numbers<[1], [0], [0], [1], [0, 0, 1, 1], [], []>} : vector<8x128xbf16>, vector<128x128xbf16>, vector<8x128xf32> -> vector<8x128xf32>
    %21 = vector.broadcast %19 : vector<1x128xf32> to vector<8x128xf32>
    %22 = arith.addf %20, %21 : vector<8x128xf32>
    %c0_17 = arith.constant 0 : index
    %c0_18 = arith.constant 0 : index
    %23 = vector.load %arg8[%c0_17, %c0_18] : memref<8x128xf32, #tpu.memory_space<vmem>>, vector<8x128xf32>
    tpu.vector_store %arg8[%c0_17, %c0_18], %22 {strides = array<i32>} : memref<8x128xf32, #tpu.memory_space<vmem>>, vector<8x128xf32>,
    return
  }
  func.func @transform_0(%arg0: i32) -> (i32, i32) {
    %c0_i32 = arith.constant 0 : i32
    %c0_i32_0 = arith.constant 0 : i32
    return %arg0, %c0_i32 : i32, i32
  }
  func.func @transform_1(%arg0: i32) -> (i32, i32) {
    %c0_i32 = arith.constant 0 : i32
    %c0_i32_0 = arith.constant 0 : i32
    %c0_i32_1 = arith.constant 0 : i32
    return %c0_i32, %c0_i32_0 : i32, i32
  }
  func.func @transform_2(%arg0: i32) -> (i32, i32) {
    %c0_i32 = arith.constant 0 : i32
    %c0_i32_0 = arith.constant 0 : i32
    %c0_i32_1 = arith.constant 0 : i32
    return %c0_i32, %c0_i32_0 : i32, i32
  }
  func.func @transform_3(%arg0: i32) -> (i32, i32) {
    %c0_i32 = arith.constant 0 : i32
    %c0_i32_0 = arith.constant 0 : i32
    %c0_i32_1 = arith.constant 0 : i32
    return %c0_i32, %c0_i32_0 : i32, i32
  }
  func.func @transform_4(%arg0: i32) -> (i32, i32) {
    %c0_i32 = arith.constant 0 : i32
    %c0_i32_0 = arith.constant 0 : i32
    %c0_i32_1 = arith.constant 0 : i32
    return %c0_i32, %c0_i32_0 : i32, i32
  }
  func.func @transform_5(%arg0: i32) -> (i32, i32) {
    %c0_i32 = arith.constant 0 : i32
    %c0_i32_0 = arith.constant 0 : i32
    %c0_i32_1 = arith.constant 0 : i32
    return %c0_i32, %c0_i32_0 : i32, i32
  }
  func.func @transform_6(%arg0: i32) -> (i32, i32) {
    %c0_i32 = arith.constant 0 : i32
    %c0_i32_0 = arith.constant 0 : i32
    %c0_i32_1 = arith.constant 0 : i32
    return %c0_i32, %c0_i32_0 : i32, i32
  }
  func.func @transform_7(%arg0: i32) -> (i32, i32) {
    %c0_i32 = arith.constant 0 : i32
    %c0_i32_0 = arith.constant 0 : i32
    return %arg0, %c0_i32 : i32, i32
  }
}

</mosaic_0001>

<llo_original>
// kernel: qnet_forward.1
$region0: #{qnet_forward.1}
  #allocation0 [shape = 'u32[]', space=smem, size = 0x4, offset = 0x4, fixed_abs, tag = 'smem constant byte address 0x4 - core index']
  #allocation1 [shape = 'u32[72,128]{1,0:T(1,128)}', space=vmem, size = 0x9000, scoped, tag = 'internal scratch']
  %s0 = inlined_call_operand.vmem [shape: f32[8,8], index: 0, kind: input, shape index: {}]
  %s1 = inlined_call_operand.vmem [shape: bf16[8,128], index: 1, kind: input, shape index: {}]
  %s2 = inlined_call_operand.vmem [shape: f32[1,128], index: 2, kind: input, shape index: {}]
  %s3 = inlined_call_operand.hbm [shape: bf16[128,128], index: 3, kind: input, shape index: {}]
  %s4 = inlined_call_operand.vmem [shape: f32[1,128], index: 4, kind: input, shape index: {}]
  %s5 = inlined_call_operand.hbm [shape: bf16[128,128], index: 5, kind: input, shape index: {}]
  %s6 = inlined_call_operand.vmem [shape: f32[1,128], index: 6, kind: input, shape index: {}]
  %s7 = inlined_call_operand.vmem [shape: f32[8,128], index: 7, kind: output, shape index: {}]
  %s8 = sld [smem:[#allocation0]]
  $region46: #{qnet_forward.1} parent=0
    _
  %s10 = ssub.s32 1, %s8
  %s11 = scalar_select 0, %s10, %s8
  $region1: #{qnet_forward.1} parent=0
    #allocation2 [shape = 'u8[32768]{0}', space=vmem, size = 0x8000, scoped, tag = 'input window, operand 3, single buffered']
    #allocation3 [shape = 's32[1]{0}', space=sflag, size = 0x4, scoped, tag = 'scoped memory for qnet_forward.1']
    #allocation4 [shape = 'u8[32768]{0}', space=vmem, size = 0x8000, scoped, tag = 'input window, operand 5, single buffered']
    #allocation5 [shape = 's32[1]{0}', space=sflag, size = 0x4, scoped, tag = 'scoped memory for qnet_forward.1']
    %12 = vsyncpa [#allocation3], 0
    %13 = vsyncpa [#allocation5], 0
    // Predicated region
    $region2: #{qnet_forward.1} parent=1 // pred_check
      _
    $region3: #{qnet_forward.1} parent=1 // pred_check_branch
      %15 = sbr.rel (0) target = $region5
    $region4: #{qnet_forward.1} parent=1 // pred_region
      _
    $region5: #{qnet_forward.1} parent=1 // pred_fallthru
      _
    // Predicated region
    $region6: #{qnet_forward.1} parent=1 // pred_check
      _
    $region7: #{qnet_forward.1} parent=1 // pred_check_branch
      %17 = sbr.rel (0) target = $region9
    $region8: #{qnet_forward.1} parent=1 // pred_region
      _
    $region9: #{qnet_forward.1} parent=1 // pred_fallthru
      _
    // Predicated region
    $region10: #{qnet_forward.1} parent=1 // pred_check
      _
    $region11: #{qnet_forward.1} parent=1 // pred_check_branch
      %19 = sbr.rel (0) target = $region13
    $region12: #{qnet_forward.1} parent=1 // pred_region
      _
    $region13: #{qnet_forward.1} parent=1 // pred_fallthru
      _
    // Predicated region
    $region14: #{qnet_forward.1} parent=1 // pred_check
      _
    $region15: #{qnet_forward.1} parent=1 // pred_check_branch
      %21 = sbr.rel (0) target = $region17
    $region16: #{qnet_forward.1} parent=1 // pred_region
      %23 = vsyncadd [#allocation3], 0
      %s24 = sshll.u32 %s3, 4
      %s25 = int_to_ptr.hbm [resolvable:$true] %s24
      %s26 = sshll.u32 [#allocation2], 4
      %s27 = int_to_ptr.vmem [resolvable:$true] %s26
      %32 = dma.hbm_to_vmem [thread:$0]  %s25, 1024, %s27, [#allocation3], 64, 64, 4
    $region17: #{qnet_forward.1} parent=1 // pred_fallthru
      _
    // Predicated region
    $region18: #{qnet_forward.1} parent=1 // pred_check
      _
    $region19: #{qnet_forward.1} parent=1 // pred_check_branch
      %34 = sbr.rel (0) target = $region21
    $region20: #{qnet_forward.1} parent=1 // pred_region
      _
    $region21: #{qnet_forward.1} parent=1 // pred_fallthru
      _
    // Predicated region
    $region22: #{qnet_forward.1} parent=1 // pred_check
      _
    $region23: #{qnet_forward.1} parent=1 // pred_check_branch
      %36 = sbr.rel (0) target = $region25
    $region24: #{qnet_forward.1} parent=1 // pred_region
      %38 = vsyncadd [#allocation5], 0
      %s39 = sshll.u32 %s5, 4
      %s40 = int_to_ptr.hbm [resolvable:$true] %s39
      %s41 = sshll.u32 [#allocation4], 4
      %s42 = int_to_ptr.vmem [resolvable:$true] %s41
      %47 = dma.hbm_to_vmem [thread:$0]  %s40, 1024, %s42, [#allocation5], 64, 64, 4
    $region25: #{qnet_forward.1} parent=1 // pred_fallthru
      _
    // Predicated region
    $region26: #{qnet_forward.1} parent=1 // pred_check
      _
    $region27: #{qnet_forward.1} parent=1 // pred_check_branch
      %49 = sbr.rel (0) target = $region29
    $region28: #{qnet_forward.1} parent=1 // pred_region
      _
    $region29: #{qnet_forward.1} parent=1 // pred_fallthru
      _
    // Predicated region
    $region30: #{qnet_forward.1} parent=1 // pred_check
      _
    $region31: #{qnet_forward.1} parent=1 // pred_check_branch
      %51 = sbr.rel (0) target = $region33
    $region32: #{qnet_forward.1} parent=1 // pred_region
      %53 = dma.done [#allocation3], 1024
    $region33: #{qnet_forward.1} parent=1 // pred_fallthru
      _
    // Predicated region
    $region34: #{qnet_forward.1} parent=1 // pred_check
      _
    $region35: #{qnet_forward.1} parent=1 // pred_check_branch
      %55 = sbr.rel (0) target = $region37
    $region36: #{qnet_forward.1} parent=1 // pred_region
      %57 = dma.done [#allocation5], 1024
    $region37: #{qnet_forward.1} parent=1 // pred_fallthru
      _
    %v59 = vld [vmem:[%s0] sm:$0xff]
    %v60 = vpack.c.bf16 %v59, %v59
    %v61 = vld [vmem:[%s1] sm:$0xf]
    %v62 = vld [vmem:[%s2] sm:$0x1]
    %v64 = vperm.slane %v62, 0
    %vm66 = vcmask 64512
    %v68 = vsel %vm66, %v60, 0
    %vm70 = vcmask 1043456
    %v72 = vsel %vm70, %v61, 0
    %74 = vmatpush.bf16.msra.mxu0 0
    %75 = vmatpush.bf16.msra.mxu0 0
    %76 = vmatpush.bf16.msra.mxu0 0
    %77 = vmatpush.bf16.msra.mxu0 0
    %78 = vmatpush.bf16.msra.mxu0 0
    %79 = vmatpush.bf16.msra.mxu0 0
    %80 = vmatpush.bf16.msra.mxu0 0
    %81 = vmatpush.bf16.msra.mxu0 %v72
    %82 = vmatmul.bf16.gmra.mxu0 %v68
    %v83 = vpop.f32.mrf.mxu0
    %v84 = vadd.f32 %v64, %v83
    %v85 = vpop.f32.mrf.mxu0
    %86 = vdwg.mxu0
    %v87 = vmax.f32 %v84, 0.0
    %v88 = vpack.c.bf16 %v87, %v87
    %v89 = vld [vmem:[#allocation2] sm:$0xf]
    %v90 = vld [vmem:[#allocation2 + $0x4] sm:$0xf]
    %v91 = vld [vmem:[#allocation2 + $0x8] sm:$0xf]
    %v92 = vld [vmem:[#allocation2 + $0xc] sm:$0xf]
    %v93 = vld [vmem:[#allocation2 + $0x10] sm:$0xf]
    %v94 = vld [vmem:[#allocation2 + $0x14] sm:$0xf]
    %v95 = vld [vmem:[#allocation2 + $0x18] sm:$0xf]
    %v96 = vld [vmem:[#allocation2 + $0x1c] sm:$0xf]
    %v97 = vld [vmem:[#allocation2 + $0x20] sm:$0xf]
    %v98 = vld [vmem:[#allocation2 + $0x24] sm:$0xf]
    %v99 = vld [vmem:[#allocation2 + $0x28] sm:$0xf]
    %v100 = vld [vmem:[#allocation2 + $0x2c] sm:$0xf]
    %v101 = vld [vmem:[#allocation2 + $0x30] sm:$0xf]
    %v102 = vld [vmem:[#allocation2 + $0x34] sm:$0xf]
    %v103 = vld [vmem:[#allocation2 + $0x38] sm:$0xf]
    %v104 = vld [vmem:[#allocation2 + $0x3c] sm:$0xf]
    %v105 = vld [vmem:[%s4] sm:$0x1]
    %v107 = vperm.slane %v105, 0
    %v125 = vunpack.c.l.b16 %v89
    %v126 = vunpack.c.l.b16 %v90
    %v127 = vunpack.c.l.b16 %v91
    %v128 = vunpack.c.l.b16 %v92
    %v129 = vunpack.c.l.b16 %v93
    %v130 = vunpack.c.l.b16 %v94
    %v131 = vunpack.c.l.b16 %v95
    %v132 = vunpack.c.l.b16 %v96
    %v133 = vunpack.c.l.b16 %v97
    %v134 = vunpack.c.l.b16 %v98
    %v135 = vunpack.c.l.b16 %v99
    %v136 = vunpack.c.l.b16 %v100
    %v137 = vunpack.c.l.b16 %v101
    %v138 = vunpack.c.l.b16 %v102
    %v139 = vunpack.c.l.b16 %v103
    %v140 = vunpack.c.l.b16 %v104
    %v141 = vpack.c.b16 %v126, %v125
    %v142 = vpack.c.b16 %v128, %v127
    %v143 = vpack.c.b16 %v130, %v129
    %v144 = vpack.c.b16 %v132, %v131
    %v145 = vpack.c.b16 %v134, %v133
    %v146 = vpack.c.b16 %v136, %v135
    %v147 = vpack.c.b16 %v138, %v137
    %v148 = vpack.c.b16 %v140, %v139
    %157 = vmatpush.bf16.msra.mxu0 %v148
    %158 = vmatpush.bf16.msra.mxu0 %v147
    %159 = vmatpush.bf16.msra.mxu0 %v146
    %160 = vmatpush.bf16.msra.mxu0 %v145
    %161 = vmatpush.bf16.msra.mxu0 %v144
    %162 = vmatpush.bf16.msra.mxu0 %v143
    %163 = vmatpush.bf16.msra.mxu0 %v142
    %164 = vmatpush.bf16.msra.mxu0 %v141
    %165 = vmatmul.bf16.gmra.mxu0 %v88
    %v166 = vpop.f32.mrf.mxu0
    %v167 = vadd.f32 %v107, %v166
    %v168 = vpop.f32.mrf.mxu0
    %169 = vdwg.mxu0
    %v170 = vmax.f32 %v167, 0.0
    %v171 = vpack.c.bf16 %v170, %v170
    %v172 = vld [vmem:[#allocation4] sm:$0xf]
    %v173 = vld [vmem:[#allocation4 + $0x4] sm:$0xf]
    %v174 = vld [vmem:[#allocation4 + $0x8] sm:$0xf]
    %v175 = vld [vmem:[#allocation4 + $0xc] sm:$0xf]
    %v176 = vld [vmem:[#allocation4 + $0x10] sm:$0xf]
    %v177 = vld [vmem:[#allocation4 + $0x14] sm:$0xf]
    %v178 = vld [vmem:[#allocation4 + $0x18] sm:$0xf]
    %v179 = vld [vmem:[#allocation4 + $0x1c] sm:$0xf]
    %v180 = vld [vmem:[#allocation4 + $0x20] sm:$0xf]
    %v181 = vld [vmem:[#allocation4 + $0x24] sm:$0xf]
    %v182 = vld [vmem:[#allocation4 + $0x28] sm:$0xf]
    %v183 = vld [vmem:[#allocation4 + $0x2c] sm:$0xf]
    %v184 = vld [vmem:[#allocation4 + $0x30] sm:$0xf]
    %v185 = vld [vmem:[#allocation4 + $0x34] sm:$0xf]
    %v186 = vld [vmem:[#allocation4 + $0x38] sm:$0xf]
    %v187 = vld [vmem:[#allocation4 + $0x3c] sm:$0xf]
    %v188 = vld [vmem:[%s6] sm:$0x1]
    %v190 = vperm.slane %v188, 0
    %v208 = vunpack.c.l.b16 %v172
    %v209 = vunpack.c.l.b16 %v173
    %v210 = vunpack.c.l.b16 %v174
    %v211 = vunpack.c.l.b16 %v175
    %v212 = vunpack.c.l.b16 %v176
    %v213 = vunpack.c.l.b16 %v177
    %v214 = vunpack.c.l.b16 %v178
    %v215 = vunpack.c.l.b16 %v179
    %v216 = vunpack.c.l.b16 %v180
    %v217 = vunpack.c.l.b16 %v181
    %v218 = vunpack.c.l.b16 %v182
    %v219 = vunpack.c.l.b16 %v183
    %v220 = vunpack.c.l.b16 %v184
    %v221 = vunpack.c.l.b16 %v185
    %v222 = vunpack.c.l.b16 %v186
    %v223 = vunpack.c.l.b16 %v187
    %v224 = vpack.c.b16 %v209, %v208
    %v225 = vpack.c.b16 %v211, %v210
    %v226 = vpack.c.b16 %v213, %v212
    %v227 = vpack.c.b16 %v215, %v214
    %v228 = vpack.c.b16 %v217, %v216
    %v229 = vpack.c.b16 %v219, %v218
    %v230 = vpack.c.b16 %v221, %v220
    %v231 = vpack.c.b16 %v223, %v222
    %240 = vmatpush.bf16.msra.mxu0 %v231
    %241 = vmatpush.bf16.msra.mxu0 %v230
    %242 = vmatpush.bf16.msra.mxu0 %v229
    %243 = vmatpush.bf16.msra.mxu0 %v228
    %244 = vmatpush.bf16.msra.mxu0 %v227
    %245 = vmatpush.bf16.msra.mxu0 %v226
    %246 = vmatpush.bf16.msra.mxu0 %v225
    %247 = vmatpush.bf16.msra.mxu0 %v224
    %248 = vmatmul.bf16.gmra.mxu0 %v171
    %v249 = vpop.f32.mrf.mxu0
    %v250 = vadd.f32 %v190, %v249
    %v251 = vpop.f32.mrf.mxu0
    %252 = vdwg.mxu0
    %253 = vst [vmem:[%s7] sm:$0xff] %v250
    // Predicated region
    $region38: #{qnet_forward.1} parent=1 // pred_check
      _
    $region39: #{qnet_forward.1} parent=1 // pred_check_branch
      %255 = sbr.rel (0) target = $region41
    $region40: #{qnet_forward.1} parent=1 // pred_region
      _
    $region41: #{qnet_forward.1} parent=1 // pred_fallthru
      _
    // Predicated region
    $region42: #{qnet_forward.1} parent=1 // pred_check
      _
    $region43: #{qnet_forward.1} parent=1 // pred_check_branch
      %257 = sbr.rel (0) target = $region45
    $region44: #{qnet_forward.1} parent=1 // pred_region
      _
    $region45: #{qnet_forward.1} parent=1 // pred_fallthru
      _
    %258 = vsyncpa [#allocation3], 1
    %259 = vsyncpa [#allocation5], 1

</llo_original>
